<compile_context>
chip_gen: v7x
topology: tpu7x:2x2x1
jax: 0.10.0
libtpu: 0.0.40
codegen_flags: <defaults>
</compile_context>

<pallas_src>
import functools

import jax
import jax.numpy as jnp
from jax.experimental import pallas as pl
from jax.experimental.pallas import tpu as pltpu


def _sigmoid_loss_kernel(logits_ref, targets_ref, loss_ref, count_ref, *, n_rows):
    x = logits_ref[...].astype(jnp.float32)   # [TN, C]
    y = targets_ref[...].astype(jnp.float32)  # [TN, C]

    # Numerically-stable BCE-with-logits (same formula PyTorch uses):
    #   loss = max(x, 0) - x*y + log(1 + exp(-|x|))
    loss = jnp.maximum(x, 0.0) - x * y + jnp.log1p(jnp.exp(-jnp.abs(x)))
    loss_ref[...] = loss.astype(loss_ref.dtype)

    # Accuracy metric: sigmoid(x) > 0.5  <=>  x > 0 (exact, no transcendental).
    predicted = (x > 0.0).astype(jnp.float32)
    matches = (y == predicted).astype(jnp.float32)

    # Mask out padded rows of the last (ragged) tile so they don't inflate
    # the match count.
    tn = x.shape[0]
    row_ids = pl.program_id(0) * tn + jax.lax.broadcasted_iota(jnp.int32, x.shape, 0)
    matches = jnp.where(row_ids < n_rows, matches, 0.0)

    # One un-normalized partial count per grid block; /N happens in the wrapper.
    count_ref[...] = jnp.sum(matches).reshape(1, 1, 1)


def _choose_row_tile(n, c, itemsize):
    """Pick a row tile ~2 MiB per input buffer (fits v5e/v6e/v7x scoped VMEM
    with double-buffered 2 inputs + 1 output), multiple of 8 sublanes."""
    target_bytes = 2 << 20
    tn = max(8, target_bytes // max(1, c * itemsize))
    tn = (tn // 8) * 8
    if tn >= n:
        return n          # single full block
    return max(8, tn)


def sigmoid_loss(logits, targets, *, row_tile=None):
    """Returns (loss [N, C] in logits.dtype, acc scalar f32)."""
    assert logits.shape == targets.shape and logits.ndim == 2
    n, c = logits.shape

    tn = row_tile if row_tile is not None else _choose_row_tile(n, c, logits.dtype.itemsize)
    g = pl.cdiv(n, tn)

    loss, partial_counts = pl.pallas_call(
        functools.partial(_sigmoid_loss_kernel, n_rows=n),
        out_shape=(
            jax.ShapeDtypeStruct((n, c), logits.dtype),
            jax.ShapeDtypeStruct((g, 1, 1), jnp.float32),
        ),
        grid=(g,),
        in_specs=[
            pl.BlockSpec((tn, c), lambda i: (i, 0)),
            pl.BlockSpec((tn, c), lambda i: (i, 0)),
        ],
        out_specs=(
            pl.BlockSpec((tn, c), lambda i: (i, 0)),
            pl.BlockSpec((1, 1, 1), lambda i: (i, 0, 0)),
        ),
        compiler_params=pltpu.CompilerParams(
            dimension_semantics=("parallel",),
        ),
    )(logits, targets)

    acc = jnp.sum(partial_counts) / jnp.float32(n)
    return loss, acc


def _reference(logits, targets):
    x = logits.astype(jnp.float32)
    y = targets.astype(jnp.float32)
    loss = jnp.maximum(x, 0.0) - x * y + jnp.log1p(jnp.exp(-jnp.abs(x)))
    predicted = (jax.nn.sigmoid(x) > 0.5).astype(jnp.float32)
    acc = jnp.sum((y == predicted).astype(jnp.float32)) / jnp.float32(x.shape[0])
    return loss.astype(logits.dtype), acc


if __name__ == "__main__":
    # TODO(synk): tensorboard / console logging from the original module has no
    # kernel equivalent; only the numeric forward pass (loss + acc) is computed.
    key = jax.random.PRNGKey(0)
    k1, k2, k3, k4 = jax.random.split(key, 4)

    # Case 1: small lane-aligned shape, single full block.
    N, C = 8, 128
    logits = jax.random.normal(k1, (N, C), dtype=jnp.float32) * 2.0
    targets = (jax.random.uniform(k2, (N, C)) > 0.5).astype(jnp.float32)
    loss, acc = sigmoid_loss(logits, targets)
    jax.block_until_ready((loss, acc))
    ref_loss, ref_acc = _reference(logits, targets)
    assert jnp.allclose(loss, ref_loss, atol=1e-5, rtol=1e-5)
    assert jnp.allclose(acc, ref_acc, atol=1e-5, rtol=1e-5)

    # Case 2: gridded path with a ragged last tile (N=20, tile=8 -> 3 blocks,
    # last block has 4 padded rows masked out of the accuracy count).
    N2, C2 = 20, 128
    logits2 = jax.random.normal(k3, (N2, C2), dtype=jnp.float32) * 2.0
    targets2 = (jax.random.uniform(k4, (N2, C2)) > 0.5).astype(jnp.float32)
    loss2, acc2 = sigmoid_loss(logits2, targets2, row_tile=8)
    jax.block_until_ready((loss2, acc2))
    ref_loss2, ref_acc2 = _reference(logits2, targets2)
    assert jnp.allclose(loss2, ref_loss2, atol=1e-5, rtol=1e-5)
    assert jnp.allclose(acc2, ref_acc2, atol=1e-5, rtol=1e-5)

    # Case 3: native bf16 inputs (no wrapper-side upcast; cast happens in-kernel).
    logits3 = logits2.astype(jnp.bfloat16)
    targets3 = targets2.astype(jnp.bfloat16)
    loss3, acc3 = sigmoid_loss(logits3, targets3, row_tile=8)
    jax.block_until_ready((loss3, acc3))
    ref_loss3, ref_acc3 = _reference(logits3, targets3)
    assert jnp.allclose(loss3.astype(jnp.float32), ref_loss3.astype(jnp.float32),
                        atol=1e-1, rtol=1e-2)
    assert jnp.allclose(acc3, ref_acc3, atol=1e-5, rtol=1e-5)

    print("KERNEL_OK")
</pallas_src>

<mosaic_0001>
module attributes {stable_mosaic.version = 11 : i64} {
  func.func @_sigmoid_loss_kernel(%arg0: i32, %arg1: memref<8x128xf32, #tpu.memory_space<vmem>>, %arg2: memref<8x128xf32, #tpu.memory_space<vmem>>, %arg3: memref<8x128xf32, #tpu.memory_space<vmem>>, %arg4: memref<1x1x1xf32, #tpu.memory_space<vmem>>) attributes {dimension_semantics = [#tpu.dimension_semantics<parallel>], iteration_bounds = array<i64: 1>, scalar_prefetch = 0 : i64, scratch_operands = 0 : i64, tpu.core_type = #tpu.core_type<tc>, window_params = [{transform_indices = @transform_0, window_bounds = array<i64: 8, 128>}, {transform_indices = @transform_1, window_bounds = array<i64: 8, 128>}, {transform_indices = @transform_2, window_bounds = array<i64: 8, 128>}, {transform_indices = @transform_3, window_bounds = array<i64: 1, 1, 1>}]} {
    %c0 = arith.constant 0 : index
    %c0_0 = arith.constant 0 : index
    %0 = vector.load %arg1[%c0, %c0_0] : memref<8x128xf32, #tpu.memory_space<vmem>>, vector<8x128xf32>
    %c0_1 = arith.constant 0 : index
    %c0_2 = arith.constant 0 : index
    %1 = vector.load %arg2[%c0_1, %c0_2] : memref<8x128xf32, #tpu.memory_space<vmem>>, vector<8x128xf32>
    %cst = arith.constant 0.000000e+00 : f32
    %2 = vector.broadcast %cst : f32 to vector<8x128xf32>
    %3 = arith.maximumf %0, %2 : vector<8x128xf32>
    %4 = arith.mulf %0, %1 : vector<8x128xf32>
    %5 = arith.subf %3, %4 : vector<8x128xf32>
    %6 = math.absf %0 : vector<8x128xf32>
    %cst_3 = arith.constant 0.000000e+00 : f32
    %7 = vector.broadcast %cst_3 : f32 to vector<8x128xf32>
    %8 = arith.subf %7, %6 : vector<8x128xf32>
    %9 = math.exp %8 : vector<8x128xf32>
    %10 = math.log1p %9 : vector<8x128xf32>
    %11 = arith.addf %5, %10 : vector<8x128xf32>
    %c0_4 = arith.constant 0 : index
    %c0_5 = arith.constant 0 : index
    %12 = vector.load %arg3[%c0_4, %c0_5] : memref<8x128xf32, #tpu.memory_space<vmem>>, vector<8x128xf32>
    tpu.vector_store %arg3[%c0_4, %c0_5], %11 {strides = array<i32>} : memref<8x128xf32, #tpu.memory_space<vmem>>, vector<8x128xf32>,
    %cst_6 = arith.constant 0.000000e+00 : f32
    %13 = vector.broadcast %cst_6 : f32 to vector<8x128xf32>
    %14 = arith.cmpf ogt, %0, %13 : vector<8x128xf32>
    %15 = arith.extui %14 : vector<8x128xi1> to vector<8x128xi32>
    %16 = arith.sitofp %15 : vector<8x128xi32> to vector<8x128xf32>
    %17 = arith.cmpf oeq, %1, %16 : vector<8x128xf32>
    %18 = arith.extui %17 : vector<8x128xi1> to vector<8x128xi32>
    %19 = arith.sitofp %18 : vector<8x128xi32> to vector<8x128xf32>
    %c8_i32 = arith.constant 8 : i32
    %20 = arith.muli %arg0, %c8_i32 : i32
    %21 = tpu.iota {dimensions = array<i32: 0>} : vector<8x128xi32>
    %22 = vector.broadcast %20 : i32 to vector<8x128xi32>
    %23 = arith.addi %22, %21 : vector<8x128xi32>
    %c8_i32_7 = arith.constant 8 : i32
    %24 = vector.broadcast %c8_i32_7 : i32 to vector<8x128xi32>
    %25 = arith.cmpi slt, %23, %24 : vector<8x128xi32>
    %cst_8 = arith.constant 0.000000e+00 : f32
    %26 = vector.broadcast %cst_8 : f32 to vector<8x128xf32>
    %27 = arith.select %25, %19, %26 : vector<8x128xi1>, vector<8x128xf32>
    %28 = vector.shape_cast %27 : vector<8x128xf32> to vector<1x8x128xf32>
    %cst_9 = arith.constant dense<0.000000e+00> : vector<1xf32>
    %29 = vector.multi_reduction <add>, %28, %cst_9 [1, 2] : vector<1x8x128xf32> to vector<1xf32>
    %30 = vector.shape_cast %29 : vector<1xf32> to vector<1x1x1xf32>
    %31 = vector.extract %30[0, 0, 0] : f32 from vector<1x1x1xf32>
    %32 = vector.broadcast %31 : f32 to vector<1x1x1xf32>
    %c0_10 = arith.constant 0 : index
    %c0_11 = arith.constant 0 : index
    %c0_12 = arith.constant 0 : index
    %33 = vector.load %arg4[%c0_10, %c0_11, %c0_12] : memref<1x1x1xf32, #tpu.memory_space<vmem>>, vector<1x1x1xf32>
    tpu.vector_store %arg4[%c0_10, %c0_11, %c0_12], %32 {strides = array<i32>} : memref<1x1x1xf32, #tpu.memory_space<vmem>>, vector<1x1x1xf32>,
    return
  }
  func.func @transform_0(%arg0: i32) -> (i32, i32) {
    %c0_i32 = arith.constant 0 : i32
    %c0_i32_0 = arith.constant 0 : i32
    return %arg0, %c0_i32 : i32, i32
  }
  func.func @transform_1(%arg0: i32) -> (i32, i32) {
    %c0_i32 = arith.constant 0 : i32
    %c0_i32_0 = arith.constant 0 : i32
    return %arg0, %c0_i32 : i32, i32
  }
  func.func @transform_2(%arg0: i32) -> (i32, i32) {
    %c0_i32 = arith.constant 0 : i32
    %c0_i32_0 = arith.constant 0 : i32
    return %arg0, %c0_i32 : i32, i32
  }
  func.func @transform_3(%arg0: i32) -> (i32, i32, i32) {
    %c0_i32 = arith.constant 0 : i32
    %c0_i32_0 = arith.constant 0 : i32
    %c0_i32_1 = arith.constant 0 : i32
    return %arg0, %c0_i32, %c0_i32_0 : i32, i32, i32
  }
}

</mosaic_0001>

<llo_original>
// kernel: tpu_custom_call.1
$region0: #{tpu_custom_call.1}
  #allocation0 [shape = 'u32[]', space=smem, size = 0x4, offset = 0x4, fixed_abs, tag = 'smem constant byte address 0x4 - core index']
  #allocation1 [shape = 'u32[144,128]{1,0:T(1,128)}', space=vmem, size = 0x12000, scoped, tag = 'internal scratch']
  %s0 = inlined_call_operand.hbm [shape: f32[8,128], index: 0, kind: input, shape index: {}]
  %s1 = inlined_call_operand.hbm [shape: f32[8,128], index: 1, kind: input, shape index: {}]
  %s2 = inlined_call_operand.hbm [shape: f32[8,128], index: 2, kind: output, shape index: {0}]
  %s3 = inlined_call_operand.hbm [shape: f32[1,1,1], index: 3, kind: output, shape index: {1}]
  %4 = xla_tuple %s2, %s3
  %s5 = sld [smem:[#allocation0]]
  $region34: #{tpu_custom_call.1} parent=0
    _
  %s7 = ssub.s32 1, %s5
  %s8 = scalar_select 0, %s7, %s5
  $region1: #{tpu_custom_call.1} parent=0
    #allocation2 [shape = 'u8[4096]{0}', space=vmem, size = 0x1000, scoped, tag = 'input window, operand 0, single buffered']
    #allocation3 [shape = 's32[1]{0}', space=sflag, size = 0x4, scoped, tag = 'scoped memory for tpu_custom_call.1']
    #allocation4 [shape = 's32[1]{0}', space=sflag, size = 0x4, scoped, tag = 'scoped memory for tpu_custom_call.1']
    #allocation5 [shape = 'u8[4096]{0}', space=vmem, size = 0x1000, scoped, tag = 'input window, operand 1, single buffered']
    #allocation6 [shape = 's32[1]{0}', space=sflag, size = 0x4, scoped, tag = 'scoped memory for tpu_custom_call.1']
    #allocation7 [shape = 'u8[4096]{0}', space=vmem, size = 0x1000, scoped, tag = 'output window, operand 0, single buffered']
    #allocation8 [shape = 'u8[512]{0}', space=vmem, size = 0x400, scoped, tag = 'output window, operand 1, single buffered']
    #allocation9 [shape = 's32[1]{0}', space=sflag, size = 0x4, scoped, tag = 'scoped memory for tpu_custom_call.1']
    %9 = vsyncpa [#allocation3], 0
    %10 = vsyncpa [#allocation6], 0
    %11 = vsyncpa [#allocation4], 0
    %12 = vsyncpa [#allocation9], 0
    // Predicated region
    $region2: #{tpu_custom_call.1} parent=1 // pred_check
      _
    $region3: #{tpu_custom_call.1} parent=1 // pred_check_branch
      %14 = sbr.rel (0) target = $region5
    $region4: #{tpu_custom_call.1} parent=1 // pred_region
      %s16 = ssub.s32 128, 128
      %17 = vsyncadd [#allocation3], %s16
      %s19 = sshll.u32 [#allocation2], 4
      %s20 = int_to_ptr.vmem [resolvable:$true] %s19
      %22 = dma.hbm_to_vmem [thread:$0]  %s0, 128, %s20, [#allocation3]
    $region5: #{tpu_custom_call.1} parent=1 // pred_fallthru
      _
    // Predicated region
    $region6: #{tpu_custom_call.1} parent=1 // pred_check
      _
    $region7: #{tpu_custom_call.1} parent=1 // pred_check_branch
      %24 = sbr.rel (0) target = $region9
    $region8: #{tpu_custom_call.1} parent=1 // pred_region
      %s26 = ssub.s32 128, 128
      %27 = vsyncadd [#allocation6], %s26
      %s29 = sshll.u32 [#allocation5], 4
      %s30 = int_to_ptr.vmem [resolvable:$true] %s29
      %32 = dma.hbm_to_vmem [thread:$0]  %s1, 128, %s30, [#allocation6]
    $region9: #{tpu_custom_call.1} parent=1 // pred_fallthru
      _
    // Predicated region
    $region10: #{tpu_custom_call.1} parent=1 // pred_check
      _
    $region11: #{tpu_custom_call.1} parent=1 // pred_check_branch
      %34 = sbr.rel (0) target = $region13
    $region12: #{tpu_custom_call.1} parent=1 // pred_region
      %35 = dma.done [#allocation3], 128
    $region13: #{tpu_custom_call.1} parent=1 // pred_fallthru
      _
    // Predicated region
    $region14: #{tpu_custom_call.1} parent=1 // pred_check
      _
    $region15: #{tpu_custom_call.1} parent=1 // pred_check_branch
      %37 = sbr.rel (0) target = $region17
    $region16: #{tpu_custom_call.1} parent=1 // pred_region
      %38 = dma.done [#allocation6], 128
    $region17: #{tpu_custom_call.1} parent=1 // pred_fallthru
      _
    %v39 = vld [vmem:[#allocation2] sm:$0xff]
    %v40 = vld [vmem:[#allocation5] sm:$0xff]
    %v41 = vmax.f32 %v39, 0.0
    %v42 = vmul.f32 %v39, %v40
    %v43 = vsub.f32 %v41, %v42
    %v44 = vand.u32 2147483647, %v39
    %v45 = vsub.f32 0.0, %v44
    %v46 = vmul.f32 %v45, 1.442695
    %v47 = vpow.pop %v46
    %v48 = vadd.f32 %v47, 1.0
    %v49 = vlog2.pop %v48
    %v50 = vmul.f32 %v49, 0.6931472
    %v51 = vmul.f32 -0.5, %v47
    %v52 = vadd.f32 %v51, 1.0
    %v53 = vmul.f32 %v52, %v47
    %v54 = vand.u32 2147483647, %v47
    %vm55 = vcmp.lt.f32.partialorder %v54, 0.0004427343
    %v56 = vsel %vm55, %v53, %v50
    %v57 = vadd.f32 %v43, %v56
    %58 = vst [vmem:[#allocation7] sm:$0xff] %v57
    %vm59 = vcmp.gt.f32.partialorder %v39, 0.0
    %v60 = vsel %vm59, 1, 0
    %v61 = vcvt.s32.f32 %v60
    %vm62 = vcmp.eq.f32.partialorder %v40, %v61
    %v63 = vsel %vm62, 1, 0
    %v64 = vcvt.s32.f32 %v63
    %s65 = smul.u32 0, 8
    %v66 = vlaneseq
    %v67 = vshrl.u32 %v66, 7
    %v68 = vstv %s65
    %v69 = vadd.s32 %v68, %v67
    %vm70 = vcmp.lt.s32.totalorder %v69, 8
    %v71 = vsel %vm70, %v64, 0.0
    %72 = vadd.xlane.f32.xlu0 %v71
    %v73 = vpop.xlane.xlu0 %72
    %v74 = vrot.slane %v73, 4
    %v75 = vadd.f32 %v73, %v74
    %v76 = vrot.slane %v75, 2
    %v77 = vadd.f32 %v75, %v76
    %v78 = vrot.slane %v77, 1
    %v79 = vadd.f32 %v77, %v78
    %s80 = vtos %v79
    %v81 = vstv %s80
    %vm82 = vcmask 0
    %83 = vst.msk [vmem:[#allocation8] sm:$0x1] %vm82, %v81
    // Predicated region
    $region18: #{tpu_custom_call.1} parent=1 // pred_check
      _
    $region19: #{tpu_custom_call.1} parent=1 // pred_check_branch
      %85 = sbr.rel (0) target = $region21
    $region20: #{tpu_custom_call.1} parent=1 // pred_region
      %s87 = ssub.s32 128, 128
      %88 = vsyncadd [#allocation4], %s87
      %s90 = sshll.u32 [#allocation7], 4
      %s91 = int_to_ptr.vmem [resolvable:$true] %s90
      %93 = dma.vmem_to_hbm [thread:$0]  %s91, 128, %s2, [#allocation4]
    $region21: #{tpu_custom_call.1} parent=1 // pred_fallthru
      _
    // Predicated region
    $region22: #{tpu_custom_call.1} parent=1 // pred_check
      _
    $region23: #{tpu_custom_call.1} parent=1 // pred_check_branch
      %95 = sbr.rel (0) target = $region25
    $region24: #{tpu_custom_call.1} parent=1 // pred_region
      %s97 = ssub.s32 16, 16
      %98 = vsyncadd [#allocation9], %s97
      %s100 = sshll.u32 [#allocation8], 4
      %s101 = int_to_ptr.vmem [resolvable:$true] %s100
      %103 = dma.vmem_to_hbm [thread:$0]  %s101, 16, %s3, [#allocation9]
    $region25: #{tpu_custom_call.1} parent=1 // pred_fallthru
      _
    // Predicated region
    $region26: #{tpu_custom_call.1} parent=1 // pred_check
      _
    $region27: #{tpu_custom_call.1} parent=1 // pred_check_branch
      %105 = sbr.rel (0) target = $region29
    $region28: #{tpu_custom_call.1} parent=1 // pred_region
      %106 = dma.done [#allocation4], 128
    $region29: #{tpu_custom_call.1} parent=1 // pred_fallthru
      _
    // Predicated region
    $region30: #{tpu_custom_call.1} parent=1 // pred_check
      _
    $region31: #{tpu_custom_call.1} parent=1 // pred_check_branch
      %108 = sbr.rel (0) target = $region33
    $region32: #{tpu_custom_call.1} parent=1 // pred_region
      %109 = dma.done [#allocation9], 16
    $region33: #{tpu_custom_call.1} parent=1 // pred_fallthru
      _
    %110 = vsyncpa [#allocation3], 1
    %111 = vsyncpa [#allocation6], 1
    %112 = vsyncpa [#allocation4], 1
    %113 = vsyncpa [#allocation9], 1

</llo_original>
